<compile_context>
chip_gen: v6e
topology: v6e:2x2x1
jax: 0.10.0
libtpu: 0.0.40
codegen_flags: <defaults>
</compile_context>

<pallas_src>
import functools

import jax
import jax.numpy as jnp
from jax import lax
from jax.experimental import pallas as pl
from jax.experimental.pallas import tpu as pltpu

BN_EPS = 1e-5
KH = KW = 3   # Block(..., kernel_size=(3, 3), stride=1, padding=1)
PAD = 1


def _block_kernel(x_ref, wt_ref, gamma_ref, beta_ref, out_ref,
                  slab_ref, cols_ref, *, n_img, cin, h, w, hp, wp, guard):
    """Fused conv3x3 (pad=1) + training-mode BN + ReLU.

    x_ref:     (1, cin, h*w)       raw image, spatially flattened (lane-dense).
    wt_ref:    (cout, 9*cin)       conv weights, tap-major / cin-minor.
    gamma_ref: (1, cout, 1)        BN gamma.
    beta_ref:  (1, cout, 1)        BN beta.
    out_ref:   (n_img, cout, h*w)  RESIDENT output block (constant index_map):
                                   holds raw conv results until the final grid
                                   step, then BN+ReLU is applied in place.
    slab_ref:  (cin, hp*wp+2*guard) VMEM scratch: zero-padded + guarded image,
                                   spatially flattened (pad built in-kernel).
    cols_ref:  (9*cin, hp*wp)      VMEM scratch: transposed im2col.
    """
    hw = h * w
    hpwp = hp * wp
    n = pl.program_id(0)

    # One-time zero of the slab: pad/guard lanes stay zero forever, the
    # interior rows are fully overwritten for every image.
    @pl.when(n == 0)
    def _():
        slab_ref[...] = jnp.zeros_like(slab_ref)

    # In-kernel zero padding: drop each raw row into the padded, flattened slab.
    for r in range(h):
        dst = guard + (r + PAD) * wp + PAD
        slab_ref[:, dst:dst + w] = x_ref[0, :, r * w:(r + 1) * w]

    # Transposed im2col: one static lane-shifted slice per tap (9 copies).
    for kh in range(KH):
        for kw in range(KW):
            t = kh * KW + kw
            start = guard + (kh - PAD) * wp + (kw - PAD)
            cols_ref[t * cin:(t + 1) * cin, :] = slab_ref[:, start:start + hpwp]

    # Single MXU matmul with all 9 taps folded into the contraction (K = 9*cin).
    acc = jnp.dot(wt_ref[...], cols_ref[...],
                  preferred_element_type=jnp.float32)          # (cout, hp*wp)

    # Crop the valid interior row-by-row straight into the lane-dense resident
    # output block (no validity mask, no XLA crop copy).
    for r in range(h):
        src = (r + PAD) * wp + PAD
        out_ref[n, :, r * w:(r + 1) * w] = acc[:, src:src + w]

    # Final grid step: global batch statistics over all resident conv results,
    # then fused scale/shift + ReLU, in place.
    @pl.when(n == pl.num_programs(0) - 1)
    def _():
        y = out_ref[...]                                   # (n_img, cout, hw)
        inv_cnt = 1.0 / float(n_img * hw)

        per_img_sum = jnp.sum(y, axis=2, keepdims=True)    # (n_img, cout, 1)
        tot = per_img_sum[0]
        for i in range(1, n_img):
            tot = tot + per_img_sum[i]
        mean = tot[None] * inv_cnt                         # (1, cout, 1)

        d = y - mean                                       # centered (two-pass)
        per_img_ssq = jnp.sum(d * d, axis=2, keepdims=True)
        tot2 = per_img_ssq[0]
        for i in range(1, n_img):
            tot2 = tot2 + per_img_ssq[i]
        var = tot2[None] * inv_cnt                         # (1, cout, 1)

        scale = gamma_ref[...] * lax.rsqrt(var + BN_EPS)   # EUP rsqrt
        shift = beta_ref[...] - mean * scale
        out_ref[...] = jnp.maximum(y * scale + shift, 0.0)


def block_forward(x_nchw, conv_w, conv_b, bn_gamma, bn_beta):
    """x_nchw: (N, Cin, H, W); conv_w: (Cout, Cin, 3, 3). Returns (N, Cout, H, W)."""
    del conv_b  # exactly cancelled by the training-mode BN mean subtraction
    N, Cin, H, W = x_nchw.shape
    Cout = conv_w.shape[0]
    HP, WP = H + 2 * PAD, W + 2 * PAD
    HPWP = HP * WP
    HW = H * W
    G = WP + PAD                      # max |tap shift| in flattened padded coords
    LG = HPWP + 2 * G
    K = KH * KW * Cin

    # ---- glue: free reshapes / casts only (no padded HBM copies) ----
    xf = x_nchw.astype(jnp.float32).reshape(N, Cin, HW)         # lane-dense input
    # (Cout, Cin, KH, KW) -> (Cout, KH*KW*Cin), tap-major / cin-minor.
    wt = jnp.transpose(conv_w, (0, 2, 3, 1)).reshape(Cout, K).astype(jnp.float32)
    gamma = bn_gamma.astype(jnp.float32).reshape(1, Cout, 1)
    beta = bn_beta.astype(jnp.float32).reshape(1, Cout, 1)

    kernel = functools.partial(_block_kernel, n_img=N, cin=Cin,
                               h=H, w=W, hp=HP, wp=WP, guard=G)

    out_flat = pl.pallas_call(
        kernel,
        out_shape=jax.ShapeDtypeStruct((N, Cout, HW), jnp.float32),
        grid=(N,),
        in_specs=[
            pl.BlockSpec((1, Cin, HW), lambda n: (n, 0, 0)),
            pl.BlockSpec((Cout, K), lambda n: (0, 0)),
            pl.BlockSpec((1, Cout, 1), lambda n: (0, 0, 0)),
            pl.BlockSpec((1, Cout, 1), lambda n: (0, 0, 0)),
        ],
        # Constant index_map -> the whole output stays resident in VMEM across
        # the image grid (conv accumulator, then BN+ReLU in place at the end).
        out_specs=pl.BlockSpec((N, Cout, HW), lambda n: (0, 0, 0)),
        scratch_shapes=[
            pltpu.VMEM((Cin, LG), jnp.float32),    # padded + guarded image slab
            pltpu.VMEM((K, HPWP), jnp.float32),    # transposed im2col
        ],
        compiler_params=pltpu.CompilerParams(
            dimension_semantics=("arbitrary",)),   # resident output across images
    )(xf, wt, gamma, beta)

    # Free metadata reshape (contiguous): (N, Cout, H*W) -> (N, Cout, H, W).
    return out_flat.reshape(N, Cout, H, W)


def reference_forward(x_nchw, conv_w, conv_b, bn_gamma, bn_beta):
    """Pure-JAX reference mirroring PyTorch Block.forward (training-mode BN)."""
    y = lax.conv_general_dilated(
        x_nchw, conv_w, window_strides=(1, 1), padding=((PAD, PAD), (PAD, PAD)),
        dimension_numbers=("NCHW", "OIHW", "NCHW"))
    y = y + conv_b[None, :, None, None]
    mean = jnp.mean(y, axis=(0, 2, 3), keepdims=True)
    var = jnp.mean(jnp.square(y - mean), axis=(0, 2, 3), keepdims=True)
    y = (y - mean) * lax.rsqrt(var + BN_EPS)
    y = y * bn_gamma[None, :, None, None] + bn_beta[None, :, None, None]
    return jnp.maximum(y, 0.0)


if __name__ == "__main__":
    key = jax.random.PRNGKey(0)
    k_x, k_w, k_b, k_g, k_be = jax.random.split(key, 5)

    N, Cin, Cout, H, W = 2, 4, 8, 16, 16

    x = jax.random.normal(k_x, (N, Cin, H, W), dtype=jnp.float32)
    # Deterministic synthetic parameters (no checkpoint load).
    fan_in = Cin * KH * KW
    conv_w = jax.random.normal(k_w, (Cout, Cin, KH, KW), jnp.float32) / jnp.sqrt(fan_in)
    conv_b = 0.1 * jax.random.normal(k_b, (Cout,), jnp.float32)
    bn_gamma = 1.0 + 0.1 * jax.random.normal(k_g, (Cout,), jnp.float32)
    bn_beta = 0.1 * jax.random.normal(k_be, (Cout,), jnp.float32)

    out = jax.block_until_ready(block_forward(x, conv_w, conv_b, bn_gamma, bn_beta))
    ref = jax.block_until_ready(reference_forward(x, conv_w, conv_b, bn_gamma, bn_beta))

    assert out.shape == (N, Cout, H, W), out.shape
    max_err = float(jnp.max(jnp.abs(out - ref)))
    assert jnp.allclose(out, ref, atol=1e-3, rtol=1e-3), max_err
    print("KERNEL_OK")
</pallas_src>

<mosaic_0001>
module attributes {stable_mosaic.version = 11 : i64} {
  func.func @_block_kernel(%arg0: i32, %arg1: memref<1x4x256xf32, #tpu.memory_space<vmem>>, %arg2: memref<8x36xf32, #tpu.memory_space<vmem>>, %arg3: memref<1x8x1xf32, #tpu.memory_space<vmem>>, %arg4: memref<1x8x1xf32, #tpu.memory_space<vmem>>, %arg5: memref<2x8x256xf32, #tpu.memory_space<vmem>>, %arg6: memref<4x362xf32, #tpu.memory_space<vmem>>, %arg7: memref<36x324xf32, #tpu.memory_space<vmem>>) attributes {dimension_semantics = [#tpu.dimension_semantics<arbitrary>], iteration_bounds = array<i64: 2>, scalar_prefetch = 0 : i64, scratch_operands = 2 : i64, tpu.core_type = #tpu.core_type<tc>, window_params = [{transform_indices = @transform_0, window_bounds = array<i64: 1, 4, 256>}, {pipeline_mode = #tpu.pipeline_mode<synchronous>, transform_indices = @transform_1, window_bounds = array<i64: 8, 36>}, {pipeline_mode = #tpu.pipeline_mode<synchronous>, transform_indices = @transform_2, window_bounds = array<i64: 1, 8, 1>}, {pipeline_mode = #tpu.pipeline_mode<synchronous>, transform_indices = @transform_3, window_bounds = array<i64: 1, 8, 1>}, {pipeline_mode = #tpu.pipeline_mode<synchronous>, transform_indices = @transform_4, window_bounds = array<i64: 2, 8, 256>}]} {
    %c0_i32 = arith.constant 0 : i32
    %0 = arith.cmpi eq, %arg0, %c0_i32 : i32
    %1 = arith.extui %0 : i1 to i32
    %c0_i32_0 = arith.constant 0 : i32
    %2 = arith.cmpi ne, %1, %c0_i32_0 : i32
    scf.if %2 {
      %cst_111 = arith.constant 0.000000e+00 : f32
      %155 = vector.broadcast %cst_111 : f32 to vector<4x362xf32>
      %c0_112 = arith.constant 0 : index
      %c0_113 = arith.constant 0 : index
      %156 = vector.load %arg6[%c0_112, %c0_113] : memref<4x362xf32, #tpu.memory_space<vmem>>, vector<4x362xf32>
      tpu.vector_store %arg6[%c0_112, %c0_113], %155 {strides = array<i32>} : memref<4x362xf32, #tpu.memory_space<vmem>>, vector<4x362xf32>,
    } else {
    }
    %c0 = arith.constant 0 : index
    %c0_1 = arith.constant 0 : index
    %c0_2 = arith.constant 0 : index
    %3 = vector.load %arg1[%c0, %c0_1, %c0_2] : memref<1x4x256xf32, #tpu.memory_space<vmem>>, vector<1x4x16xf32>
    %4 = vector.shape_cast %3 : vector<1x4x16xf32> to vector<4x16xf32>
    %c0_3 = arith.constant 0 : index
    %c38 = arith.constant 38 : index
    %5 = vector.load %arg6[%c0_3, %c38] : memref<4x362xf32, #tpu.memory_space<vmem>>, vector<4x16xf32>
    tpu.vector_store %arg6[%c0_3, %c38], %4 {strides = array<i32>} : memref<4x362xf32, #tpu.memory_space<vmem>>, vector<4x16xf32>,
    %c0_4 = arith.constant 0 : index
    %c0_5 = arith.constant 0 : index
    %c16 = arith.constant 16 : index
    %6 = vector.load %arg1[%c0_4, %c0_5, %c16] : memref<1x4x256xf32, #tpu.memory_space<vmem>>, vector<1x4x16xf32>
    %7 = vector.shape_cast %6 : vector<1x4x16xf32> to vector<4x16xf32>
    %c0_6 = arith.constant 0 : index
    %c56 = arith.constant 56 : index
    %8 = vector.load %arg6[%c0_6, %c56] : memref<4x362xf32, #tpu.memory_space<vmem>>, vector<4x16xf32>
    tpu.vector_store %arg6[%c0_6, %c56], %7 {strides = array<i32>} : memref<4x362xf32, #tpu.memory_space<vmem>>, vector<4x16xf32>,
    %c0_7 = arith.constant 0 : index
    %c0_8 = arith.constant 0 : index
    %c32 = arith.constant 32 : index
    %9 = vector.load %arg1[%c0_7, %c0_8, %c32] : memref<1x4x256xf32, #tpu.memory_space<vmem>>, vector<1x4x16xf32>
    %10 = vector.shape_cast %9 : vector<1x4x16xf32> to vector<4x16xf32>
    %c0_9 = arith.constant 0 : index
    %c74 = arith.constant 74 : index
    %11 = vector.load %arg6[%c0_9, %c74] : memref<4x362xf32, #tpu.memory_space<vmem>>, vector<4x16xf32>
    tpu.vector_store %arg6[%c0_9, %c74], %10 {strides = array<i32>} : memref<4x362xf32, #tpu.memory_space<vmem>>, vector<4x16xf32>,
    %c0_10 = arith.constant 0 : index
    %c0_11 = arith.constant 0 : index
    %c48 = arith.constant 48 : index
    %12 = vector.load %arg1[%c0_10, %c0_11, %c48] : memref<1x4x256xf32, #tpu.memory_space<vmem>>, vector<1x4x16xf32>
    %13 = vector.shape_cast %12 : vector<1x4x16xf32> to vector<4x16xf32>
    %c0_12 = arith.constant 0 : index
    %c92 = arith.constant 92 : index
    %14 = vector.load %arg6[%c0_12, %c92] : memref<4x362xf32, #tpu.memory_space<vmem>>, vector<4x16xf32>
    tpu.vector_store %arg6[%c0_12, %c92], %13 {strides = array<i32>} : memref<4x362xf32, #tpu.memory_space<vmem>>, vector<4x16xf32>,
    %c0_13 = arith.constant 0 : index
    %c0_14 = arith.constant 0 : index
    %c64 = arith.constant 64 : index
    %15 = vector.load %arg1[%c0_13, %c0_14, %c64] : memref<1x4x256xf32, #tpu.memory_space<vmem>>, vector<1x4x16xf32>
    %16 = vector.shape_cast %15 : vector<1x4x16xf32> to vector<4x16xf32>
    %c0_15 = arith.constant 0 : index
    %c110 = arith.constant 110 : index
    %17 = vector.load %arg6[%c0_15, %c110] : memref<4x362xf32, #tpu.memory_space<vmem>>, vector<4x16xf32>
    tpu.vector_store %arg6[%c0_15, %c110], %16 {strides = array<i32>} : memref<4x362xf32, #tpu.memory_space<vmem>>, vector<4x16xf32>,
    %c0_16 = arith.constant 0 : index
    %c0_17 = arith.constant 0 : index
    %c80 = arith.constant 80 : index
    %18 = vector.load %arg1[%c0_16, %c0_17, %c80] : memref<1x4x256xf32, #tpu.memory_space<vmem>>, vector<1x4x16xf32>
    %19 = vector.shape_cast %18 : vector<1x4x16xf32> to vector<4x16xf32>
    %c0_18 = arith.constant 0 : index
    %c128 = arith.constant 128 : index
    %20 = vector.load %arg6[%c0_18, %c128] : memref<4x362xf32, #tpu.memory_space<vmem>>, vector<4x16xf32>
    tpu.vector_store %arg6[%c0_18, %c128], %19 {strides = array<i32>} : memref<4x362xf32, #tpu.memory_space<vmem>>, vector<4x16xf32>,
    %c0_19 = arith.constant 0 : index
    %c0_20 = arith.constant 0 : index
    %c96 = arith.constant 96 : index
    %21 = vector.load %arg1[%c0_19, %c0_20, %c96] : memref<1x4x256xf32, #tpu.memory_space<vmem>>, vector<1x4x16xf32>
    %22 = vector.shape_cast %21 : vector<1x4x16xf32> to vector<4x16xf32>
    %c0_21 = arith.constant 0 : index
    %c146 = arith.constant 146 : index
    %23 = vector.load %arg6[%c0_21, %c146] : memref<4x362xf32, #tpu.memory_space<vmem>>, vector<4x16xf32>
    tpu.vector_store %arg6[%c0_21, %c146], %22 {strides = array<i32>} : memref<4x362xf32, #tpu.memory_space<vmem>>, vector<4x16xf32>,
    %c0_22 = arith.constant 0 : index
    %c0_23 = arith.constant 0 : index
    %c112 = arith.constant 112 : index
    %24 = vector.load %arg1[%c0_22, %c0_23, %c112] : memref<1x4x256xf32, #tpu.memory_space<vmem>>, vector<1x4x16xf32>
    %25 = vector.shape_cast %24 : vector<1x4x16xf32> to vector<4x16xf32>
    %c0_24 = arith.constant 0 : index
    %c164 = arith.constant 164 : index
    %26 = vector.load %arg6[%c0_24, %c164] : memref<4x362xf32, #tpu.memory_space<vmem>>, vector<4x16xf32>
    tpu.vector_store %arg6[%c0_24, %c164], %25 {strides = array<i32>} : memref<4x362xf32, #tpu.memory_space<vmem>>, vector<4x16xf32>,
    %c0_25 = arith.constant 0 : index
    %c0_26 = arith.constant 0 : index
    %c128_27 = arith.constant 128 : index
    %27 = vector.load %arg1[%c0_25, %c0_26, %c128_27] : memref<1x4x256xf32, #tpu.memory_space<vmem>>, vector<1x4x16xf32>
    %28 = vector.shape_cast %27 : vector<1x4x16xf32> to vector<4x16xf32>
    %c0_28 = arith.constant 0 : index
    %c182 = arith.constant 182 : index
    %29 = vector.load %arg6[%c0_28, %c182] : memref<4x362xf32, #tpu.memory_space<vmem>>, vector<4x16xf32>
    tpu.vector_store %arg6[%c0_28, %c182], %28 {strides = array<i32>} : memref<4x362xf32, #tpu.memory_space<vmem>>, vector<4x16xf32>,
    %c0_29 = arith.constant 0 : index
    %c0_30 = arith.constant 0 : index
    %c144 = arith.constant 144 : index
    %30 = vector.load %arg1[%c0_29, %c0_30, %c144] : memref<1x4x256xf32, #tpu.memory_space<vmem>>, vector<1x4x16xf32>
    %31 = vector.shape_cast %30 : vector<1x4x16xf32> to vector<4x16xf32>
    %c0_31 = arith.constant 0 : index
    %c200 = arith.constant 200 : index
    %32 = vector.load %arg6[%c0_31, %c200] : memref<4x362xf32, #tpu.memory_space<vmem>>, vector<4x16xf32>
    tpu.vector_store %arg6[%c0_31, %c200], %31 {strides = array<i32>} : memref<4x362xf32, #tpu.memory_space<vmem>>, vector<4x16xf32>,
    %c0_32 = arith.constant 0 : index
    %c0_33 = arith.constant 0 : index
    %c160 = arith.constant 160 : index
    %33 = vector.load %arg1[%c0_32, %c0_33, %c160] : memref<1x4x256xf32, #tpu.memory_space<vmem>>, vector<1x4x16xf32>
    %34 = vector.shape_cast %33 : vector<1x4x16xf32> to vector<4x16xf32>
    %c0_34 = arith.constant 0 : index
    %c218 = arith.constant 218 : index
    %35 = vector.load %arg6[%c0_34, %c218] : memref<4x362xf32, #tpu.memory_space<vmem>>, vector<4x16xf32>
    tpu.vector_store %arg6[%c0_34, %c218], %34 {strides = array<i32>} : memref<4x362xf32, #tpu.memory_space<vmem>>, vector<4x16xf32>,
    %c0_35 = arith.constant 0 : index
    %c0_36 = arith.constant 0 : index
    %c176 = arith.constant 176 : index
    %36 = vector.load %arg1[%c0_35, %c0_36, %c176] : memref<1x4x256xf32, #tpu.memory_space<vmem>>, vector<1x4x16xf32>
    %37 = vector.shape_cast %36 : vector<1x4x16xf32> to vector<4x16xf32>
    %c0_37 = arith.constant 0 : index
    %c236 = arith.constant 236 : index
    %38 = vector.load %arg6[%c0_37, %c236] : memref<4x362xf32, #tpu.memory_space<vmem>>, vector<4x16xf32>
    tpu.vector_store %arg6[%c0_37, %c236], %37 {strides = array<i32>} : memref<4x362xf32, #tpu.memory_space<vmem>>, vector<4x16xf32>,
    %c0_38 = arith.constant 0 : index
    %c0_39 = arith.constant 0 : index
    %c192 = arith.constant 192 : index
    %39 = vector.load %arg1[%c0_38, %c0_39, %c192] : memref<1x4x256xf32, #tpu.memory_space<vmem>>, vector<1x4x16xf32>
    %40 = vector.shape_cast %39 : vector<1x4x16xf32> to vector<4x16xf32>
    %c0_40 = arith.constant 0 : index
    %c254 = arith.constant 254 : index
    %41 = vector.load %arg6[%c0_40, %c254] : memref<4x362xf32, #tpu.memory_space<vmem>>, vector<4x16xf32>
    tpu.vector_store %arg6[%c0_40, %c254], %40 {strides = array<i32>} : memref<4x362xf32, #tpu.memory_space<vmem>>, vector<4x16xf32>,
    %c0_41 = arith.constant 0 : index
    %c0_42 = arith.constant 0 : index
    %c208 = arith.constant 208 : index
    %42 = vector.load %arg1[%c0_41, %c0_42, %c208] : memref<1x4x256xf32, #tpu.memory_space<vmem>>, vector<1x4x16xf32>
    %43 = vector.shape_cast %42 : vector<1x4x16xf32> to vector<4x16xf32>
    %c0_43 = arith.constant 0 : index
    %c272 = arith.constant 272 : index
    %44 = vector.load %arg6[%c0_43, %c272] : memref<4x362xf32, #tpu.memory_space<vmem>>, vector<4x16xf32>
    tpu.vector_store %arg6[%c0_43, %c272], %43 {strides = array<i32>} : memref<4x362xf32, #tpu.memory_space<vmem>>, vector<4x16xf32>,
    %c0_44 = arith.constant 0 : index
    %c0_45 = arith.constant 0 : index
    %c224 = arith.constant 224 : index
    %45 = vector.load %arg1[%c0_44, %c0_45, %c224] : memref<1x4x256xf32, #tpu.memory_space<vmem>>, vector<1x4x16xf32>
    %46 = vector.shape_cast %45 : vector<1x4x16xf32> to vector<4x16xf32>
    %c0_46 = arith.constant 0 : index
    %c290 = arith.constant 290 : index
    %47 = vector.load %arg6[%c0_46, %c290] : memref<4x362xf32, #tpu.memory_space<vmem>>, vector<4x16xf32>
    tpu.vector_store %arg6[%c0_46, %c290], %46 {strides = array<i32>} : memref<4x362xf32, #tpu.memory_space<vmem>>, vector<4x16xf32>,
    %c0_47 = arith.constant 0 : index
    %c0_48 = arith.constant 0 : index
    %c240 = arith.constant 240 : index
    %48 = vector.load %arg1[%c0_47, %c0_48, %c240] : memref<1x4x256xf32, #tpu.memory_space<vmem>>, vector<1x4x16xf32>
    %49 = vector.shape_cast %48 : vector<1x4x16xf32> to vector<4x16xf32>
    %c0_49 = arith.constant 0 : index
    %c308 = arith.constant 308 : index
    %50 = vector.load %arg6[%c0_49, %c308] : memref<4x362xf32, #tpu.memory_space<vmem>>, vector<4x16xf32>
    tpu.vector_store %arg6[%c0_49, %c308], %49 {strides = array<i32>} : memref<4x362xf32, #tpu.memory_space<vmem>>, vector<4x16xf32>,
    %c0_50 = arith.constant 0 : index
    %c0_51 = arith.constant 0 : index
    %51 = vector.load %arg6[%c0_50, %c0_51] : memref<4x362xf32, #tpu.memory_space<vmem>>, vector<4x324xf32>
    %c0_52 = arith.constant 0 : index
    %c0_53 = arith.constant 0 : index
    %52 = vector.load %arg7[%c0_52, %c0_53] : memref<36x324xf32, #tpu.memory_space<vmem>>, vector<4x324xf32>
    tpu.vector_store %arg7[%c0_52, %c0_53], %51 {strides = array<i32>} : memref<36x324xf32, #tpu.memory_space<vmem>>, vector<4x324xf32>,
    %c0_54 = arith.constant 0 : index
    %c1 = arith.constant 1 : index
    %53 = vector.load %arg6[%c0_54, %c1] : memref<4x362xf32, #tpu.memory_space<vmem>>, vector<4x324xf32>
    %c4 = arith.constant 4 : index
    %c0_55 = arith.constant 0 : index
    %54 = vector.load %arg7[%c4, %c0_55] : memref<36x324xf32, #tpu.memory_space<vmem>>, vector<4x324xf32>
    tpu.vector_store %arg7[%c4, %c0_55], %53 {strides = array<i32>} : memref<36x324xf32, #tpu.memory_space<vmem>>, vector<4x324xf32>,
    %c0_56 = arith.constant 0 : index
    %c2 = arith.constant 2 : index
    %55 = vector.load %arg6[%c0_56, %c2] : memref<4x362xf32, #tpu.memory_space<vmem>>, vector<4x324xf32>
    %c8 = arith.constant 8 : index
    %c0_57 = arith.constant 0 : index
    %56 = vector.load %arg7[%c8, %c0_57] : memref<36x324xf32, #tpu.memory_space<vmem>>, vector<4x324xf32>
    tpu.vector_store %arg7[%c8, %c0_57], %55 {strides = array<i32>} : memref<36x324xf32, #tpu.memory_space<vmem>>, vector<4x324xf32>,
    %c0_58 = arith.constant 0 : index
    %c18 = arith.constant 18 : index
    %57 = vector.load %arg6[%c0_58, %c18] : memref<4x362xf32, #tpu.memory_space<vmem>>, vector<4x324xf32>
    %c12 = arith.constant 12 : index
    %c0_59 = arith.constant 0 : index
    %58 = vector.load %arg7[%c12, %c0_59] : memref<36x324xf32, #tpu.memory_space<vmem>>, vector<4x324xf32>
    tpu.vector_store %arg7[%c12, %c0_59], %57 {strides = array<i32>} : memref<36x324xf32, #tpu.memory_space<vmem>>, vector<4x324xf32>,
    %c0_60 = arith.constant 0 : index
    %c19 = arith.constant 19 : index
    %59 = vector.load %arg6[%c0_60, %c19] : memref<4x362xf32, #tpu.memory_space<vmem>>, vector<4x324xf32>
    %c16_61 = arith.constant 16 : index
    %c0_62 = arith.constant 0 : index
    %60 = vector.load %arg7[%c16_61, %c0_62] : memref<36x324xf32, #tpu.memory_space<vmem>>, vector<4x324xf32>
    tpu.vector_store %arg7[%c16_61, %c0_62], %59 {strides = array<i32>} : memref<36x324xf32, #tpu.memory_space<vmem>>, vector<4x324xf32>,
    %c0_63 = arith.constant 0 : index
    %c20 = arith.constant 20 : index
    %61 = vector.load %arg6[%c0_63, %c20] : memref<4x362xf32, #tpu.memory_space<vmem>>, vector<4x324xf32>
    %c20_64 = arith.constant 20 : index
    %c0_65 = arith.constant 0 : index
    %62 = vector.load %arg7[%c20_64, %c0_65] : memref<36x324xf32, #tpu.memory_space<vmem>>, vector<4x324xf32>
    tpu.vector_store %arg7[%c20_64, %c0_65], %61 {strides = array<i32>} : memref<36x324xf32, #tpu.memory_space<vmem>>, vector<4x324xf32>,
    %c0_66 = arith.constant 0 : index
    %c36 = arith.constant 36 : index
    %63 = vector.load %arg6[%c0_66, %c36] : memref<4x362xf32, #tpu.memory_space<vmem>>, vector<4x324xf32>
    %c24 = arith.constant 24 : index
    %c0_67 = arith.constant 0 : index
    %64 = vector.load %arg7[%c24, %c0_67] : memref<36x324xf32, #tpu.memory_space<vmem>>, vector<4x324xf32>
    tpu.vector_store %arg7[%c24, %c0_67], %63 {strides = array<i32>} : memref<36x324xf32, #tpu.memory_space<vmem>>, vector<4x324xf32>,
    %c0_68 = arith.constant 0 : index
    %c37 = arith.constant 37 : index
    %65 = vector.load %arg6[%c0_68, %c37] : memref<4x362xf32, #tpu.memory_space<vmem>>, vector<4x324xf32>
    %c28 = arith.constant 28 : index
    %c0_69 = arith.constant 0 : index
    %66 = vector.load %arg7[%c28, %c0_69] : memref<36x324xf32, #tpu.memory_space<vmem>>, vector<4x324xf32>
    tpu.vector_store %arg7[%c28, %c0_69], %65 {strides = array<i32>} : memref<36x324xf32, #tpu.memory_space<vmem>>, vector<4x324xf32>,
    %c0_70 = arith.constant 0 : index
    %c38_71 = arith.constant 38 : index
    %67 = vector.load %arg6[%c0_70, %c38_71] : memref<4x362xf32, #tpu.memory_space<vmem>>, vector<4x324xf32>
    %c32_72 = arith.constant 32 : index
    %c0_73 = arith.constant 0 : index
    %68 = vector.load %arg7[%c32_72, %c0_73] : memref<36x324xf32, #tpu.memory_space<vmem>>, vector<4x324xf32>
    tpu.vector_store %arg7[%c32_72, %c0_73], %67 {strides = array<i32>} : memref<36x324xf32, #tpu.memory_space<vmem>>, vector<4x324xf32>,
    %c0_74 = arith.constant 0 : index
    %c0_75 = arith.constant 0 : index
    %69 = vector.load %arg2[%c0_74, %c0_75] : memref<8x36xf32, #tpu.memory_space<vmem>>, vector<8x36xf32>
    %c0_76 = arith.constant 0 : index
    %c0_77 = arith.constant 0 : index
    %70 = vector.load %arg7[%c0_76, %c0_77] : memref<36x324xf32, #tpu.memory_space<vmem>>, vector<36x324xf32>
    %cst = arith.constant dense<0.000000e+00> : vector<8x324xf32>
    %71 = tpu.matmul %69, %70, %cst {dimension_numbers = #tpu.dot_dimension_numbers<[1], [0], [0], [1], [0, 0, 1, 1], [], []>} : vector<8x36xf32>, vector<36x324xf32>, vector<8x324xf32> -> vector<8x324xf32>
    %72 = vector.extract_strided_slice %71 {offsets = [0, 19], sizes = [8, 16], strides = [1, 1]} : vector<8x324xf32> to vector<8x16xf32>
    %73 = arith.index_cast %arg0 : i32 to index
    %c0_78 = arith.constant 0 : index
    %c0_79 = arith.constant 0 : index
    %74 = vector.load %arg5[%73, %c0_78, %c0_79] : memref<2x8x256xf32, #tpu.memory_space<vmem>>, vector<1x8x16xf32>
    %75 = vector.shape_cast %74 : vector<1x8x16xf32> to vector<8x16xf32>
    %76 = vector.shape_cast %72 : vector<8x16xf32> to vector<1x8x16xf32>
    tpu.vector_store %arg5[%73, %c0_78, %c0_79], %76 {strides = array<i32>} : memref<2x8x256xf32, #tpu.memory_space<vmem>>, vector<1x8x16xf32>,
    %77 = vector.extract_strided_slice %71 {offsets = [0, 37], sizes = [8, 16], strides = [1, 1]} : vector<8x324xf32> to vector<8x16xf32>
    %78 = arith.index_cast %arg0 : i32 to index
    %c0_80 = arith.constant 0 : index
    %c16_81 = arith.constant 16 : index
    %79 = vector.load %arg5[%78, %c0_80, %c16_81] : memref<2x8x256xf32, #tpu.memory_space<vmem>>, vector<1x8x16xf32>
    %80 = vector.shape_cast %79 : vector<1x8x16xf32> to vector<8x16xf32>
    %81 = vector.shape_cast %77 : vector<8x16xf32> to vector<1x8x16xf32>
    tpu.vector_store %arg5[%78, %c0_80, %c16_81], %81 {strides = array<i32>} : memref<2x8x256xf32, #tpu.memory_space<vmem>>, vector<1x8x16xf32>,
    %82 = vector.extract_strided_slice %71 {offsets = [0, 55], sizes = [8, 16], strides = [1, 1]} : vector<8x324xf32> to vector<8x16xf32>
    %83 = arith.index_cast %arg0 : i32 to index
    %c0_82 = arith.constant 0 : index
    %c32_83 = arith.constant 32 : index
    %84 = vector.load %arg5[%83, %c0_82, %c32_83] : memref<2x8x256xf32, #tpu.memory_space<vmem>>, vector<1x8x16xf32>
    %85 = vector.shape_cast %84 : vector<1x8x16xf32> to vector<8x16xf32>
    %86 = vector.shape_cast %82 : vector<8x16xf32> to vector<1x8x16xf32>
    tpu.vector_store %arg5[%83, %c0_82, %c32_83], %86 {strides = array<i32>} : memref<2x8x256xf32, #tpu.memory_space<vmem>>, vector<1x8x16xf32>,
    %87 = vector.extract_strided_slice %71 {offsets = [0, 73], sizes = [8, 16], strides = [1, 1]} : vector<8x324xf32> to vector<8x16xf32>
    %88 = arith.index_cast %arg0 : i32 to index
    %c0_84 = arith.constant 0 : index
    %c48_85 = arith.constant 48 : index
    %89 = vector.load %arg5[%88, %c0_84, %c48_85] : memref<2x8x256xf32, #tpu.memory_space<vmem>>, vector<1x8x16xf32>
    %90 = vector.shape_cast %89 : vector<1x8x16xf32> to vector<8x16xf32>
    %91 = vector.shape_cast %87 : vector<8x16xf32> to vector<1x8x16xf32>
    tpu.vector_store %arg5[%88, %c0_84, %c48_85], %91 {strides = array<i32>} : memref<2x8x256xf32, #tpu.memory_space<vmem>>, vector<1x8x16xf32>,
    %92 = vector.extract_strided_slice %71 {offsets = [0, 91], sizes = [8, 16], strides = [1, 1]} : vector<8x324xf32> to vector<8x16xf32>
    %93 = arith.index_cast %arg0 : i32 to index
    %c0_86 = arith.constant 0 : index
    %c64_87 = arith.constant 64 : index
    %94 = vector.load %arg5[%93, %c0_86, %c64_87] : memref<2x8x256xf32, #tpu.memory_space<vmem>>, vector<1x8x16xf32>
    %95 = vector.shape_cast %94 : vector<1x8x16xf32> to vector<8x16xf32>
    %96 = vector.shape_cast %92 : vector<8x16xf32> to vector<1x8x16xf32>
    tpu.vector_store %arg5[%93, %c0_86, %c64_87], %96 {strides = array<i32>} : memref<2x8x256xf32, #tpu.memory_space<vmem>>, vector<1x8x16xf32>,
    %97 = vector.extract_strided_slice %71 {offsets = [0, 109], sizes = [8, 16], strides = [1, 1]} : vector<8x324xf32> to vector<8x16xf32>
    %98 = arith.index_cast %arg0 : i32 to index
    %c0_88 = arith.constant 0 : index
    %c80_89 = arith.constant 80 : index
    %99 = vector.load %arg5[%98, %c0_88, %c80_89] : memref<2x8x256xf32, #tpu.memory_space<vmem>>, vector<1x8x16xf32>
    %100 = vector.shape_cast %99 : vector<1x8x16xf32> to vector<8x16xf32>
    %101 = vector.shape_cast %97 : vector<8x16xf32> to vector<1x8x16xf32>
    tpu.vector_store %arg5[%98, %c0_88, %c80_89], %101 {strides = array<i32>} : memref<2x8x256xf32, #tpu.memory_space<vmem>>, vector<1x8x16xf32>,
    %102 = vector.extract_strided_slice %71 {offsets = [0, 127], sizes = [8, 16], strides = [1, 1]} : vector<8x324xf32> to vector<8x16xf32>
    %103 = arith.index_cast %arg0 : i32 to index
    %c0_90 = arith.constant 0 : index
    %c96_91 = arith.constant 96 : index
    %104 = vector.load %arg5[%103, %c0_90, %c96_91] : memref<2x8x256xf32, #tpu.memory_space<vmem>>, vector<1x8x16xf32>
    %105 = vector.shape_cast %104 : vector<1x8x16xf32> to vector<8x16xf32>
    %106 = vector.shape_cast %102 : vector<8x16xf32> to vector<1x8x16xf32>
    tpu.vector_store %arg5[%103, %c0_90, %c96_91], %106 {strides = array<i32>} : memref<2x8x256xf32, #tpu.memory_space<vmem>>, vector<1x8x16xf32>,
    %107 = vector.extract_strided_slice %71 {offsets = [0, 145], sizes = [8, 16], strides = [1, 1]} : vector<8x324xf32> to vector<8x16xf32>
    %108 = arith.index_cast %arg0 : i32 to index
    %c0_92 = arith.constant 0 : index
    %c112_93 = arith.constant 112 : index
    %109 = vector.load %arg5[%108, %c0_92, %c112_93] : memref<2x8x256xf32, #tpu.memory_space<vmem>>, vector<1x8x16xf32>
    %110 = vector.shape_cast %109 : vector<1x8x16xf32> to vector<8x16xf32>
    %111 = vector.shape_cast %107 : vector<8x16xf32> to vector<1x8x16xf32>
    tpu.vector_store %arg5[%108, %c0_92, %c112_93], %111 {strides = array<i32>} : memref<2x8x256xf32, #tpu.memory_space<vmem>>, vector<1x8x16xf32>,
    %112 = vector.extract_strided_slice %71 {offsets = [0, 163], sizes = [8, 16], strides = [1, 1]} : vector<8x324xf32> to vector<8x16xf32>
    %113 = arith.index_cast %arg0 : i32 to index
    %c0_94 = arith.constant 0 : index
    %c128_95 = arith.constant 128 : index
    %114 = vector.load %arg5[%113, %c0_94, %c128_95] : memref<2x8x256xf32, #tpu.memory_space<vmem>>, vector<1x8x16xf32>
    %115 = vector.shape_cast %114 : vector<1x8x16xf32> to vector<8x16xf32>
    %116 = vector.shape_cast %112 : vector<8x16xf32> to vector<1x8x16xf32>
    tpu.vector_store %arg5[%113, %c0_94, %c128_95], %116 {strides = array<i32>} : memref<2x8x256xf32, #tpu.memory_space<vmem>>, vector<1x8x16xf32>,
    %117 = vector.extract_strided_slice %71 {offsets = [0, 181], sizes = [8, 16], strides = [1, 1]} : vector<8x324xf32> to vector<8x16xf32>
    %118 = arith.index_cast %arg0 : i32 to index
    %c0_96 = arith.constant 0 : index
    %c144_97 = arith.constant 144 : index
    %119 = vector.load %arg5[%118, %c0_96, %c144_97] : memref<2x8x256xf32, #tpu.memory_space<vmem>>, vector<1x8x16xf32>
    %120 = vector.shape_cast %119 : vector<1x8x16xf32> to vector<8x16xf32>
    %121 = vector.shape_cast %117 : vector<8x16xf32> to vector<1x8x16xf32>
    tpu.vector_store %arg5[%118, %c0_96, %c144_97], %121 {strides = array<i32>} : memref<2x8x256xf32, #tpu.memory_space<vmem>>, vector<1x8x16xf32>,
    %122 = vector.extract_strided_slice %71 {offsets = [0, 199], sizes = [8, 16], strides = [1, 1]} : vector<8x324xf32> to vector<8x16xf32>
    %123 = arith.index_cast %arg0 : i32 to index
    %c0_98 = arith.constant 0 : index
    %c160_99 = arith.constant 160 : index
    %124 = vector.load %arg5[%123, %c0_98, %c160_99] : memref<2x8x256xf32, #tpu.memory_space<vmem>>, vector<1x8x16xf32>
    %125 = vector.shape_cast %124 : vector<1x8x16xf32> to vector<8x16xf32>
    %126 = vector.shape_cast %122 : vector<8x16xf32> to vector<1x8x16xf32>
    tpu.vector_store %arg5[%123, %c0_98, %c160_99], %126 {strides = array<i32>} : memref<2x8x256xf32, #tpu.memory_space<vmem>>, vector<1x8x16xf32>,
    %127 = vector.extract_strided_slice %71 {offsets = [0, 217], sizes = [8, 16], strides = [1, 1]} : vector<8x324xf32> to vector<8x16xf32>
    %128 = arith.index_cast %arg0 : i32 to index
    %c0_100 = arith.constant 0 : index
    %c176_101 = arith.constant 176 : index
    %129 = vector.load %arg5[%128, %c0_100, %c176_101] : memref<2x8x256xf32, #tpu.memory_space<vmem>>, vector<1x8x16xf32>
    %130 = vector.shape_cast %129 : vector<1x8x16xf32> to vector<8x16xf32>
    %131 = vector.shape_cast %127 : vector<8x16xf32> to vector<1x8x16xf32>
    tpu.vector_store %arg5[%128, %c0_100, %c176_101], %131 {strides = array<i32>} : memref<2x8x256xf32, #tpu.memory_space<vmem>>, vector<1x8x16xf32>,
    %132 = vector.extract_strided_slice %71 {offsets = [0, 235], sizes = [8, 16], strides = [1, 1]} : vector<8x324xf32> to vector<8x16xf32>
    %133 = arith.index_cast %arg0 : i32 to index
    %c0_102 = arith.constant 0 : index
    %c192_103 = arith.constant 192 : index
    %134 = vector.load %arg5[%133, %c0_102, %c192_103] : memref<2x8x256xf32, #tpu.memory_space<vmem>>, vector<1x8x16xf32>
    %135 = vector.shape_cast %134 : vector<1x8x16xf32> to vector<8x16xf32>
    %136 = vector.shape_cast %132 : vector<8x16xf32> to vector<1x8x16xf32>
    tpu.vector_store %arg5[%133, %c0_102, %c192_103], %136 {strides = array<i32>} : memref<2x8x256xf32, #tpu.memory_space<vmem>>, vector<1x8x16xf32>,
    %137 = vector.extract_strided_slice %71 {offsets = [0, 253], sizes = [8, 16], strides = [1, 1]} : vector<8x324xf32> to vector<8x16xf32>
    %138 = arith.index_cast %arg0 : i32 to index
    %c0_104 = arith.constant 0 : index
    %c208_105 = arith.constant 208 : index
    %139 = vector.load %arg5[%138, %c0_104, %c208_105] : memref<2x8x256xf32, #tpu.memory_space<vmem>>, vector<1x8x16xf32>
    %140 = vector.shape_cast %139 : vector<1x8x16xf32> to vector<8x16xf32>
    %141 = vector.shape_cast %137 : vector<8x16xf32> to vector<1x8x16xf32>
    tpu.vector_store %arg5[%138, %c0_104, %c208_105], %141 {strides = array<i32>} : memref<2x8x256xf32, #tpu.memory_space<vmem>>, vector<1x8x16xf32>,
    %142 = vector.extract_strided_slice %71 {offsets = [0, 271], sizes = [8, 16], strides = [1, 1]} : vector<8x324xf32> to vector<8x16xf32>
    %143 = arith.index_cast %arg0 : i32 to index
    %c0_106 = arith.constant 0 : index
    %c224_107 = arith.constant 224 : index
    %144 = vector.load %arg5[%143, %c0_106, %c224_107] : memref<2x8x256xf32, #tpu.memory_space<vmem>>, vector<1x8x16xf32>
    %145 = vector.shape_cast %144 : vector<1x8x16xf32> to vector<8x16xf32>
    %146 = vector.shape_cast %142 : vector<8x16xf32> to vector<1x8x16xf32>
    tpu.vector_store %arg5[%143, %c0_106, %c224_107], %146 {strides = array<i32>} : memref<2x8x256xf32, #tpu.memory_space<vmem>>, vector<1x8x16xf32>,
    %147 = vector.extract_strided_slice %71 {offsets = [0, 289], sizes = [8, 16], strides = [1, 1]} : vector<8x324xf32> to vector<8x16xf32>
    %148 = arith.index_cast %arg0 : i32 to index
    %c0_108 = arith.constant 0 : index
    %c240_109 = arith.constant 240 : index
    %149 = vector.load %arg5[%148, %c0_108, %c240_109] : memref<2x8x256xf32, #tpu.memory_space<vmem>>, vector<1x8x16xf32>
    %150 = vector.shape_cast %149 : vector<1x8x16xf32> to vector<8x16xf32>
    %151 = vector.shape_cast %147 : vector<8x16xf32> to vector<1x8x16xf32>
    tpu.vector_store %arg5[%148, %c0_108, %c240_109], %151 {strides = array<i32>} : memref<2x8x256xf32, #tpu.memory_space<vmem>>, vector<1x8x16xf32>,
    %c1_i32 = arith.constant 1 : i32
    %152 = arith.cmpi eq, %arg0, %c1_i32 : i32
    %153 = arith.extui %152 : i1 to i32
    %c0_i32_110 = arith.constant 0 : i32
    %154 = arith.cmpi ne, %153, %c0_i32_110 : i32
    scf.if %154 {
      %c0_111 = arith.constant 0 : index
      %c0_112 = arith.constant 0 : index
      %c0_113 = arith.constant 0 : index
      %155 = vector.load %arg5[%c0_111, %c0_112, %c0_113] : memref<2x8x256xf32, #tpu.memory_space<vmem>>, vector<2x8x256xf32>
      %cst_114 = arith.constant dense<0.000000e+00> : vector<2x8xf32>
      %156 = vector.multi_reduction <add>, %155, %cst_114 [2] : vector<2x8x256xf32> to vector<2x8xf32>
      %157 = vector.shape_cast %156 : vector<2x8xf32> to vector<2x8x1xf32>
      %158 = vector.extract_strided_slice %157 {offsets = [0, 0, 0], sizes = [1, 8, 1], strides = [1, 1, 1]} : vector<2x8x1xf32> to vector<1x8x1xf32>
      %159 = vector.shape_cast %158 : vector<1x8x1xf32> to vector<8x1xf32>
      %160 = vector.extract_strided_slice %157 {offsets = [1, 0, 0], sizes = [1, 8, 1], strides = [1, 1, 1]} : vector<2x8x1xf32> to vector<1x8x1xf32>
      %161 = vector.shape_cast %160 : vector<1x8x1xf32> to vector<8x1xf32>
      %162 = arith.addf %159, %161 : vector<8x1xf32>
      %163 = vector.shape_cast %162 : vector<8x1xf32> to vector<1x8x1xf32>
      %cst_115 = arith.constant 0.001953125 : f32
      %164 = vector.broadcast %cst_115 : f32 to vector<1x8x1xf32>
      %165 = arith.mulf %163, %164 : vector<1x8x1xf32>
      %166 = vector.broadcast %165 : vector<1x8x1xf32> to vector<2x8x256xf32>
      %167 = arith.subf %155, %166 : vector<2x8x256xf32>
      %168 = arith.mulf %167, %167 : vector<2x8x256xf32>
      %cst_116 = arith.constant dense<0.000000e+00> : vector<2x8xf32>
      %169 = vector.multi_reduction <add>, %168, %cst_116 [2] : vector<2x8x256xf32> to vector<2x8xf32>
      %170 = vector.shape_cast %169 : vector<2x8xf32> to vector<2x8x1xf32>
      %171 = vector.extract_strided_slice %170 {offsets = [0, 0, 0], sizes = [1, 8, 1], strides = [1, 1, 1]} : vector<2x8x1xf32> to vector<1x8x1xf32>
      %172 = vector.shape_cast %171 : vector<1x8x1xf32> to vector<8x1xf32>
      %173 = vector.extract_strided_slice %170 {offsets = [1, 0, 0], sizes = [1, 8, 1], strides = [1, 1, 1]} : vector<2x8x1xf32> to vector<1x8x1xf32>
      %174 = vector.shape_cast %173 : vector<1x8x1xf32> to vector<8x1xf32>
      %175 = arith.addf %172, %174 : vector<8x1xf32>
      %176 = vector.shape_cast %175 : vector<8x1xf32> to vector<1x8x1xf32>
      %cst_117 = arith.constant 0.001953125 : f32
      %177 = vector.broadcast %cst_117 : f32 to vector<1x8x1xf32>
      %178 = arith.mulf %176, %177 : vector<1x8x1xf32>
      %c0_118 = arith.constant 0 : index
      %c0_119 = arith.constant 0 : index
      %c0_120 = arith.constant 0 : index
      %179 = vector.load %arg3[%c0_118, %c0_119, %c0_120] : memref<1x8x1xf32, #tpu.memory_space<vmem>>, vector<1x8x1xf32>
      %cst_121 = arith.constant 9.99999974E-6 : f32
      %180 = vector.broadcast %cst_121 : f32 to vector<1x8x1xf32>
      %181 = arith.addf %178, %180 : vector<1x8x1xf32>
      %182 = math.rsqrt %181 : vector<1x8x1xf32>
      %183 = arith.mulf %179, %182 : vector<1x8x1xf32>
      %c0_122 = arith.constant 0 : index
      %c0_123 = arith.constant 0 : index
      %c0_124 = arith.constant 0 : index
      %184 = vector.load %arg4[%c0_122, %c0_123, %c0_124] : memref<1x8x1xf32, #tpu.memory_space<vmem>>, vector<1x8x1xf32>
      %185 = arith.mulf %165, %183 : vector<1x8x1xf32>
      %186 = arith.subf %184, %185 : vector<1x8x1xf32>
      %187 = vector.broadcast %183 : vector<1x8x1xf32> to vector<2x8x256xf32>
      %188 = arith.mulf %155, %187 : vector<2x8x256xf32>
      %189 = vector.broadcast %186 : vector<1x8x1xf32> to vector<2x8x256xf32>
      %190 = arith.addf %188, %189 : vector<2x8x256xf32>
      %cst_125 = arith.constant 0.000000e+00 : f32
      %191 = vector.broadcast %cst_125 : f32 to vector<2x8x256xf32>
      %192 = arith.maximumf %190, %191 : vector<2x8x256xf32>
      %c0_126 = arith.constant 0 : index
      %c0_127 = arith.constant 0 : index
      %c0_128 = arith.constant 0 : index
      %193 = vector.load %arg5[%c0_126, %c0_127, %c0_128] : memref<2x8x256xf32, #tpu.memory_space<vmem>>, vector<2x8x256xf32>
      tpu.vector_store %arg5[%c0_126, %c0_127, %c0_128], %192 {strides = array<i32>} : memref<2x8x256xf32, #tpu.memory_space<vmem>>, vector<2x8x256xf32>,
    } else {
    }
    return
  }
  func.func @transform_0(%arg0: i32) -> (i32, i32, i32) {
    %c0_i32 = arith.constant 0 : i32
    %c0_i32_0 = arith.constant 0 : i32
    %c0_i32_1 = arith.constant 0 : i32
    return %arg0, %c0_i32, %c0_i32_0 : i32, i32, i32
  }
  func.func @transform_1(%arg0: i32) -> (i32, i32) {
    %c0_i32 = arith.constant 0 : i32
    %c0_i32_0 = arith.constant 0 : i32
    %c0_i32_1 = arith.constant 0 : i32
    return %c0_i32, %c0_i32_0 : i32, i32
  }
  func.func @transform_2(%arg0: i32) -> (i32, i32, i32) {
    %c0_i32 = arith.constant 0 : i32
    %c0_i32_0 = arith.constant 0 : i32
    %c0_i32_1 = arith.constant 0 : i32
    %c0_i32_2 = arith.constant 0 : i32
    return %c0_i32, %c0_i32_0, %c0_i32_1 : i32, i32, i32
  }
  func.func @transform_3(%arg0: i32) -> (i32, i32, i32) {
    %c0_i32 = arith.constant 0 : i32
    %c0_i32_0 = arith.constant 0 : i32
    %c0_i32_1 = arith.constant 0 : i32
    %c0_i32_2 = arith.constant 0 : i32
    return %c0_i32, %c0_i32_0, %c0_i32_1 : i32, i32, i32
  }
  func.func @transform_4(%arg0: i32) -> (i32, i32, i32) {
    %c0_i32 = arith.constant 0 : i32
    %c0_i32_0 = arith.constant 0 : i32
    %c0_i32_1 = arith.constant 0 : i32
    %c0_i32_2 = arith.constant 0 : i32
    return %c0_i32, %c0_i32_0, %c0_i32_1 : i32, i32, i32
  }
}

</mosaic_0001>

<llo_original>
// kernel: tpu_custom_call.1
$region0: #{tpu_custom_call.1}
  #allocation0 [shape = 'u32[]', space=smem, size = 0x4, offset = 0x4, fixed_abs, tag = 'smem constant byte address 0x4 - core index']
  #allocation1 [shape = 'u32[144,128]{1,0:T(1,128)}', space=vmem, size = 0x12000, scoped, tag = 'internal scratch']
  #allocation2 [shape = 'f32[4,362]{1,0:T(4,128)}', space=vmem, size = 0x1800, scoped, tag = 'scratch operand']
  #allocation3 [shape = 'f32[36,324]{1,0:T(8,128)}', space=vmem, size = 0xf000, scoped, tag = 'scratch operand']
  %s0 = inlined_call_operand.vmem [shape: f32[2,4,256], index: 0, kind: input, shape index: {}]
  %s1 = inlined_call_operand.hbm [shape: f32[8,36], index: 1, kind: input, shape index: {}]
  %s2 = inlined_call_operand.vmem [shape: f32[1,8,1], index: 2, kind: input, shape index: {}]
  %s3 = inlined_call_operand.vmem [shape: f32[1,8,1], index: 3, kind: input, shape index: {}]
  %s4 = inlined_call_operand.hbm [shape: f32[2,8,256], index: 4, kind: output, shape index: {}]
  %s5 = sld [smem:[#allocation0]]
  $region61: #{tpu_custom_call.1} parent=0
    _
  %s7 = ssub.s32 1, %s5
  %s8 = scalar_select 0, %s7, %s5
  $region1: #{tpu_custom_call.1} parent=0
    #allocation4 [shape = 'u8[4096]{0}', space=vmem, size = 0x1000, scoped, tag = 'input window, operand 1, single buffered']
    #allocation5 [shape = 's32[2]{0}', space=sflag, size = 0x8, scoped, tag = 'scoped memory for tpu_custom_call.1']
    #allocation6 [shape = 's32[2]{0}', space=sflag, size = 0x8, scoped, tag = 'scoped memory for tpu_custom_call.1']
    #allocation7 [shape = 'u8[16384]{0}', space=vmem, size = 0x4000, scoped, tag = 'output window, operand 0, single buffered']
    %9 = vsyncpa [#allocation5], 0
    %10 = vsyncpa [#allocation6], 0
    loop: start=0, step=1, limit=4
    $region2: #{tpu_custom_call.1} parent=1 // loop_pre_header
      _
    $region3: #{tpu_custom_call.1} parent=1 // loop_header
      %s12 = sphi 0, %s16
      %p13 = scmp.ge.s32.totalorder %s12, 4
      %s22 = sphi 0, %s24
      %s25 = sphi 0, %s22
      %s26 = sphi 0, %s25
      %s42 = sphi 0, %s26
      %s46 = sphi 0, %s46
      %s48 = sphi 0, %s46
      %s49 = sphi 0, %s48
      %s63 = sphi 0, %s49
      %s67 = sphi 0, %s67
      %s69 = sphi 0, %s67
      %s70 = sphi 0, %s69
      %s84 = sphi 0, %s70
      %s88 = sphi 0, %s88
      %s90 = sphi 0, %s88
      %s91 = sphi 0, %s90
      %s105 = sphi 0, %s91
      %s109 = sphi 0, %s109
      %s111 = sphi 0, %s109
      %s112 = sphi 0, %s111
      %s126 = sphi 0, %s112
    $region4: #{tpu_custom_call.1} parent=1 // loop_header_branch
      %15 = sbr.rel (%p13) target = $region8
    $region5: #{tpu_custom_call.1} parent=1 // loop_body
      %s17 = ssub.s32 %s12, 1
      %s18 = ssub.s32 %s12, 2
      %s19 = sadd.s32 %s12, 1
      %s20 = ssub.s32 %s12, %s19
      %p21 = scmp.eq.s32.totalorder %s20, 0
      %s23 = sadd.s32 %s22, 1
      %s24 = scalar_select %p21, %s22, %s23
      %p27 = pneg %p21
      %p28 = scmp.eq.s32.totalorder %s12, 1
      %p29 = por %p27, %p28
      %p30 = scmp.ne.s32.totalorder %s22, %s25
      %p31 = scmp.eq.s32.totalorder %s12, 0
      %p32 = por %p30, %p31
      %p33 = scmp.ne.s32.totalorder %s22, %s25
      %p34 = scmp.eq.s32.totalorder %s17, 1
      %p35 = por %p33, %p34
      %p36 = scmp.ne.s32.totalorder %s25, %s26
      %p37 = scmp.eq.s32.totalorder %s17, 0
      %p38 = por %p36, %p37
      %p39 = scmp.ne.s32.totalorder %s25, %s26
      %p40 = scmp.eq.s32.totalorder %s18, 1
      %p41 = por %p39, %p40
      %p43 = scmp.ne.s32.totalorder %s26, %s42
      %p44 = scmp.eq.s32.totalorder %s18, 0
      %p45 = por %p43, %p44
      %s47 = sadd.s32 %s46, 1
      %p50 = scmp.eq.s32.totalorder %s12, 1
      %p51 = scmp.ne.s32.totalorder %s46, %s48
      %p52 = scmp.eq.s32.totalorder %s12, 0
      %p53 = por %p51, %p52
      %p54 = scmp.ne.s32.totalorder %s46, %s48
      %p55 = scmp.eq.s32.totalorder %s17, 1
      %p56 = por %p54, %p55
      %p57 = scmp.ne.s32.totalorder %s48, %s49
      %p58 = scmp.eq.s32.totalorder %s17, 0
      %p59 = por %p57, %p58
      %p60 = scmp.ne.s32.totalorder %s48, %s49
      %p61 = scmp.eq.s32.totalorder %s18, 1
      %p62 = por %p60, %p61
      %p64 = scmp.ne.s32.totalorder %s49, %s63
      %p65 = scmp.eq.s32.totalorder %s18, 0
      %p66 = por %p64, %p65
      %s68 = sadd.s32 %s67, 1
      %p71 = scmp.eq.s32.totalorder %s12, 1
      %p72 = scmp.ne.s32.totalorder %s67, %s69
      %p73 = scmp.eq.s32.totalorder %s12, 0
      %p74 = por %p72, %p73
      %p75 = scmp.ne.s32.totalorder %s67, %s69
      %p76 = scmp.eq.s32.totalorder %s17, 1
      %p77 = por %p75, %p76
      %p78 = scmp.ne.s32.totalorder %s69, %s70
      %p79 = scmp.eq.s32.totalorder %s17, 0
      %p80 = por %p78, %p79
      %p81 = scmp.ne.s32.totalorder %s69, %s70
      %p82 = scmp.eq.s32.totalorder %s18, 1
      %p83 = por %p81, %p82
      %p85 = scmp.ne.s32.totalorder %s70, %s84
      %p86 = scmp.eq.s32.totalorder %s18, 0
      %p87 = por %p85, %p86
      %s89 = sadd.s32 %s88, 1
      %p92 = scmp.eq.s32.totalorder %s12, 1
      %p93 = scmp.ne.s32.totalorder %s88, %s90
      %p94 = scmp.eq.s32.totalorder %s12, 0
      %p95 = por %p93, %p94
      %p96 = scmp.ne.s32.totalorder %s88, %s90
      %p97 = scmp.eq.s32.totalorder %s17, 1
      %p98 = por %p96, %p97
      %p99 = scmp.ne.s32.totalorder %s90, %s91
      %p100 = scmp.eq.s32.totalorder %s17, 0
      %p101 = por %p99, %p100
      %p102 = scmp.ne.s32.totalorder %s90, %s91
      %p103 = scmp.eq.s32.totalorder %s18, 1
      %p104 = por %p102, %p103
      %p106 = scmp.ne.s32.totalorder %s91, %s105
      %p107 = scmp.eq.s32.totalorder %s18, 0
      %p108 = por %p106, %p107
      %s110 = sadd.s32 %s109, 1
      %p113 = scmp.eq.s32.totalorder %s12, 1
      %p114 = scmp.ne.s32.totalorder %s109, %s111
      %p115 = scmp.eq.s32.totalorder %s12, 0
      %p116 = por %p114, %p115
      %p117 = scmp.ne.s32.totalorder %s109, %s111
      %p118 = scmp.eq.s32.totalorder %s17, 1
      %p119 = por %p117, %p118
      %p120 = scmp.ne.s32.totalorder %s111, %s112
      %p121 = scmp.eq.s32.totalorder %s17, 0
      %p122 = por %p120, %p121
      %p123 = scmp.ne.s32.totalorder %s111, %s112
      %p124 = scmp.eq.s32.totalorder %s18, 1
      %p125 = por %p123, %p124
      %p127 = scmp.ne.s32.totalorder %s112, %s126
      %p128 = scmp.eq.s32.totalorder %s18, 0
      %p129 = por %p127, %p128
      %p130 = scmp.le.s32.totalorder 1, %s12
      %p131 = scmp.lt.s32.totalorder %s12, 3
      %p132 = pnand %p130, %p131
      %p133 = pneg %p132
      // Predicated region
      $region9: #{tpu_custom_call.1} parent=5 // pred_check
        _
      $region10: #{tpu_custom_call.1} parent=5 // pred_check_branch
        %135 = sbr.rel (%p132) target = $region12
      $region11: #{tpu_custom_call.1} parent=5 // pred_region
        %s136 = ssub.s32 %s12, 1
        // Predicated region
        $region13: #{tpu_custom_call.1} parent=11 // pred_check
          %p137 = pneg %p59
        $region14: #{tpu_custom_call.1} parent=11 // pred_check_branch
          %139 = sbr.rel (%p137) target = $region16
        $region15: #{tpu_custom_call.1} parent=11 // pred_region
          %s141 = ssub.s32 128, 128
          %142 = vsyncadd [#allocation5], %s141
          %s144 = sshll.u32 [#allocation4], 4
          %s145 = int_to_ptr.vmem [resolvable:$true] %s144
          %147 = dma.hbm_to_vmem [thread:$0]  %s1, 128, %s145, [#allocation5]
        $region16: #{tpu_custom_call.1} parent=11 // pred_fallthru
          _
        // Predicated region
        $region17: #{tpu_custom_call.1} parent=11 // pred_check
          %p148 = pneg %p80
        $region18: #{tpu_custom_call.1} parent=11 // pred_check_branch
          %150 = sbr.rel (%p148) target = $region20
        $region19: #{tpu_custom_call.1} parent=11 // pred_region
          _
        $region20: #{tpu_custom_call.1} parent=11 // pred_fallthru
          _
        // Predicated region
        $region21: #{tpu_custom_call.1} parent=11 // pred_check
          %p151 = pneg %p101
        $region22: #{tpu_custom_call.1} parent=11 // pred_check_branch
          %153 = sbr.rel (%p151) target = $region24
        $region23: #{tpu_custom_call.1} parent=11 // pred_region
          _
        $region24: #{tpu_custom_call.1} parent=11 // pred_fallthru
          _
      $region12: #{tpu_custom_call.1} parent=5 // pred_fallthru
        _
      %p154 = scmp.lt.s32.totalorder %s12, 2
      // Predicated region
      $region25: #{tpu_custom_call.1} parent=5 // pred_check
        %p155 = pneg %p154
      $region26: #{tpu_custom_call.1} parent=5 // pred_check_branch
        %157 = sbr.rel (%p155) target = $region28
      $region27: #{tpu_custom_call.1} parent=5 // pred_region
        // Predicated region
        $region29: #{tpu_custom_call.1} parent=27 // pred_check
          %p158 = pneg %p32
        $region30: #{tpu_custom_call.1} parent=27 // pred_check_branch
          %160 = sbr.rel (%p158) target = $region32
        $region31: #{tpu_custom_call.1} parent=27 // pred_region
          %p161 = scmp.lt.s32.totalorder %s12, 1
          %s162 = scalar_select %p161, %s12, 1
          %s163 = smul.addr %s162, 2
          %s164 = smul.addr %s163, 4
          %s165 = scalar_lea.vmem %s0, %s164
        $region32: #{tpu_custom_call.1} parent=27 // pred_fallthru
          _
      $region28: #{tpu_custom_call.1} parent=5 // pred_fallthru
        _
      %p166 = scmp.le.s32.totalorder 1, %s12
      %p167 = scmp.lt.s32.totalorder %s12, 3
      %p168 = pnand %p166, %p167
      %p169 = pneg %p168
      // Predicated region
      $region33: #{tpu_custom_call.1} parent=5 // pred_check
        _
      $region34: #{tpu_custom_call.1} parent=5 // pred_check_branch
        %171 = sbr.rel (%p168) target = $region36
      $region35: #{tpu_custom_call.1} parent=5 // pred_region
        %s172 = ssub.s32 %s12, 1
        // Predicated region
        $region37: #{tpu_custom_call.1} parent=35 // pred_check
          %p173 = pneg %p59
        $region38: #{tpu_custom_call.1} parent=35 // pred_check_branch
          %175 = sbr.rel (%p173) target = $region40
        $region39: #{tpu_custom_call.1} parent=35 // pred_region
          %176 = dma.done [#allocation5], 128
        $region40: #{tpu_custom_call.1} parent=35 // pred_fallthru
          _
        %p177 = scmp.lt.s32.totalorder %s17, 1
        %s178 = scalar_select %p177, %s17, 1
        %s179 = smul.addr %s178, 2
        %s180 = smul.addr %s179, 4
        %s181 = scalar_lea.vmem %s0, %s180
        %p182 = pneg %p38
        %p183 = pneg %p35
        %p184 = pneg %p59
        %p185 = pneg %p56
        %p186 = pneg %p80
        %p187 = pneg %p77
        %p188 = pneg %p101
        %p189 = pneg %p98
        %p190 = pneg %p122
        %p191 = pneg %p119
        %p192 = scmp.lt.s32.totalorder %s17, 1
        %s193 = scalar_select %p192, %s17, 1
        %s194 = smul.addr %s193, 2
        %s195 = smul.addr %s194, 4
        %s196 = scalar_lea.vmem %s0, %s195
        %p197 = scmp.eq.s32.totalorder %s17, 0
        // Predicated region
        $region41: #{tpu_custom_call.1} parent=35 // pred_check
          %p198 = pneg %p197
        $region42: #{tpu_custom_call.1} parent=35 // pred_check_branch
          %200 = sbr.rel (%p198) target = $region44
        $region43: #{tpu_custom_call.1} parent=35 // pred_region
          %201 = vst [vmem:[#allocation2] sm:$0xff] 0.0
          %vm202 = vcmask 863232
          %203 = vst.msk [vmem:[#allocation2 + $0x8] sm:$0xf] %vm202, 0.0
        $region44: #{tpu_custom_call.1} parent=35 // pred_fallthru
          _
        %v204 = vld [vmem:[%s196] sm:$0xf]
        %206 = vrot.lane.b32.xlu0 %v204, 38
        %v207 = vpop.permute.xlu0 %206
        %vm209 = vcmask 437552
        %210 = vst.msk [vmem:[#allocation2] sm:$0xf] %vm209, %v207
        %v211 = vld [vmem:[%s196] sm:$0xf]
        %213 = vrot.lane.b32.xlu0 %v211, 40
        %v214 = vpop.permute.xlu0 %213
        %vm216 = vcmask 585152
        %217 = vst.msk [vmem:[#allocation2] sm:$0xf] %vm216, %v214
        %v218 = vld [vmem:[%s196] sm:$0xf]
        %220 = vrot.lane.b32.xlu0 %v218, 42
        %v221 = vpop.permute.xlu0 %220
        %vm223 = vcmask 732752
        %224 = vst.msk [vmem:[#allocation2] sm:$0xf] %vm223, %v221
        %v225 = vld [vmem:[%s196] sm:$0xf]
        %227 = vrot.lane.b32.xlu0 %v225, 44
        %v228 = vpop.permute.xlu0 %227
        %vm230 = vcmask 880352
        %231 = vst.msk [vmem:[#allocation2] sm:$0xf] %vm230, %v228
        %v232 = vld [vmem:[%s196] sm:$0xf]
        %234 = vrot.lane.b32.xlu0 %v232, 46
        %v235 = vpop.permute.xlu0 %234
        %vm237 = vcmask 1027952
        %238 = vst.msk [vmem:[#allocation2] sm:$0xf] %vm237, %v235
        %v239 = vld [vmem:[%s196] sm:$0xf]
        %241 = vrot.lane.b32.xlu0 %v239, 48
        %v242 = vpop.permute.xlu0 %241
        %vm244 = vcmask 125952
        %245 = vst.msk [vmem:[#allocation2 + $0x4] sm:$0xf] %vm244, %v242
        %v246 = vld [vmem:[%s196] sm:$0xf]
        %248 = vrot.lane.b32.xlu0 %v246, 50
        %v249 = vpop.permute.xlu0 %248
        %vm251 = vcmask 273552
        %252 = vst.msk [vmem:[#allocation2 + $0x4] sm:$0xf] %vm251, %v249
        %v253 = vld [vmem:[%s196] sm:$0xf]
        %255 = vrot.lane.b32.xlu0 %v253, 52
        %v256 = vpop.permute.xlu0 %255
        %vm258 = vcmask 421152
        %259 = vst.msk [vmem:[#allocation2 + $0x4] sm:$0xf] %vm258, %v256
        %v260 = vld [vmem:[%s196 + $0x4] sm:$0xf]
        %262 = vrot.lane.b32.xlu0 %v260, 54
        %v263 = vpop.permute.xlu0 %262
        %vm265 = vcmask 568752
        %266 = vst.msk [vmem:[#allocation2 + $0x4] sm:$0xf] %vm265, %v263
        %v267 = vld [vmem:[%s196 + $0x4] sm:$0xf]
        %269 = vrot.lane.b32.xlu0 %v267, 56
        %v270 = vpop.permute.xlu0 %269
        %vm272 = vcmask 716352
        %273 = vst.msk [vmem:[#allocation2 + $0x4] sm:$0xf] %vm272, %v270
        %v274 = vld [vmem:[%s196 + $0x4] sm:$0xf]
        %276 = vrot.lane.b32.xlu0 %v274, 58
        %v277 = vpop.permute.xlu0 %276
        %vm279 = vcmask 863952
        %280 = vst.msk [vmem:[#allocation2 + $0x4] sm:$0xf] %vm279, %v277
        %v281 = vld [vmem:[%s196 + $0x4] sm:$0xf]
        %283 = vrot.lane.b32.xlu0 %v281, 60
        %v284 = vpop.permute.xlu0 %283
        %vm286 = vcmask 1011552
        %287 = vst.msk [vmem:[#allocation2 + $0x4] sm:$0xf] %vm286, %v284
        %v288 = vld [vmem:[%s196 + $0x4] sm:$0xf]
        %290 = vrot.lane.b32.xlu0 %v288, 62
        %v291 = vpop.permute.xlu0 %290
        %v292 = vrot.slane %v291, 4
        %vm293 = vcmask 506880
        %v294 = vsel %vm293, %v292, %v291
        %vm296 = vcmask 1044464
        %vm297 = vcmask 113668
        %vm298 = vmor %vm297, %vm296
        %299 = vst.msk [vmem:[#allocation2 + $0x4] sm:$0xff] %vm298, %v294
        %v300 = vld [vmem:[%s196 + $0x4] sm:$0xf]
        %302 = vrot.lane.b32.xlu0 %v300, 64
        %v303 = vpop.permute.xlu0 %302
        %vm305 = vcmask 257152
        %306 = vst.msk [vmem:[#allocation2 + $0x8] sm:$0xf] %vm305, %v303
        %v307 = vld [vmem:[%s196 + $0x4] sm:$0xf]
        %309 = vrot.lane.b32.xlu0 %v307, 66
        %v310 = vpop.permute.xlu0 %309
        %vm312 = vcmask 404752
        %313 = vst.msk [vmem:[#allocation2 + $0x8] sm:$0xf] %vm312, %v310
        %v314 = vld [vmem:[%s196 + $0x4] sm:$0xf]
        %316 = vrot.lane.b32.xlu0 %v314, 68
        %v317 = vpop.permute.xlu0 %316
        %vm319 = vcmask 552352
        %320 = vst.msk [vmem:[#allocation2 + $0x8] sm:$0xf] %vm319, %v317
        %v321 = vld [vmem:[#allocation2] sm:$0xff]
        %v322 = vld [vmem:[#allocation2 + $0x8] sm:$0xf]
        %v324 = vcombine.high %v321, %v321
        %326 = vst [vmem:[#allocation3] sm:$0xf] %v321
        %327 = vst [vmem:[#allocation3 + $0x8] sm:$0xf] %v324
        %vm328 = vcmask 551936
        %329 = vst.msk [vmem:[#allocation3 + $0x10] sm:$0xf] %vm328, %v322
        %v330 = vld [vmem:[#allocation2] sm:$0xff]
        %v331 = vld [vmem:[#allocation2 + $0x8] sm:$0xf]
        %v334 = vcombine.low %v330, %v330
        %v335 = vcombine.low %v331, %v331
        %336 = vrot.lane.b32.xlu0 %v334, 127
        %v337 = vpop.permute.xlu0 %336
        %338 = vrot.lane.b32.xlu0 %v330, 127
        %v339 = vpop.permute.xlu0 %338
        %340 = vrot.lane.b32.xlu0 %v335, 127
        %v341 = vpop.permute.xlu0 %340
        %vm342 = vcmask 1039360
        %v343 = vsel %vm342, %v337, %v339
        %v344 = vsel %vm342, %v339, %v341
        %348 = vst [vmem:[#allocation3] sm:$0xf0] %v343
        %349 = vst [vmem:[#allocation3 + $0x8] sm:$0xf0] %v344
        %vm350 = vcmask 556036
        %351 = vst.msk [vmem:[#allocation3 + $0x10] sm:$0xf0] %vm350, %v341
        %v352 = vld [vmem:[#allocation2] sm:$0xff]
        %v353 = vld [vmem:[#allocation2 + $0x8] sm:$0xf]
        %v356 = vcombine.high %v352, %v352
        %357 = vrot.lane.b32.xlu0 %v352, 126
        %v358 = vpop.permute.xlu0 %357
        %359 = vrot.lane.b32.xlu0 %v356, 126
        %v360 = vpop.permute.xlu0 %359
        %361 = vrot.lane.b32.xlu0 %v353, 126
        %v362 = vpop.permute.xlu0 %361
        %vm363 = vcmask 1031168
        %v364 = vsel %vm363, %v358, %v360
        %v365 = vsel %vm363, %v360, %v362
        %369 = vst [vmem:[#allocation3 + $0x18] sm:$0xf] %v364
        %370 = vst [vmem:[#allocation3 + $0x20] sm:$0xf] %v365
        %371 = vst.msk [vmem:[#allocation3 + $0x28] sm:$0xf] %vm328, %v362
        %v372 = vld [vmem:[#allocation2] sm:$0xff]
        %v373 = vld [vmem:[#allocation2 + $0x8] sm:$0xf]
        %v376 = vcombine.low %v372, %v372
        %v377 = vcombine.low %v373, %v373
        %378 = vrot.lane.b32.xlu0 %v376, 110
        %v379 = vpop.permute.xlu0 %378
        %380 = vrot.lane.b32.xlu0 %v372, 110
        %v381 = vpop.permute.xlu0 %380
        %382 = vrot.lane.b32.xlu0 %v377, 110
        %v383 = vpop.permute.xlu0 %382
        %vm384 = vcmask 900096
        %v385 = vsel %vm384, %v379, %v381
        %v386 = vsel %vm384, %v381, %v383
        %390 = vst [vmem:[#allocation3 + $0x18] sm:$0xf0] %v385
        %391 = vst [vmem:[#allocation3 + $0x20] sm:$0xf0] %v386
        %392 = vst.msk [vmem:[#allocation3 + $0x28] sm:$0xf0] %vm350, %v383
        %v393 = vld [vmem:[#allocation2] sm:$0xff]
        %v394 = vld [vmem:[#allocation2 + $0x8] sm:$0xf]
        %v397 = vcombine.high %v393, %v393
        %398 = vrot.lane.b32.xlu0 %v393, 109
        %v399 = vpop.permute.xlu0 %398
        %400 = vrot.lane.b32.xlu0 %v397, 109
        %v401 = vpop.permute.xlu0 %400
        %402 = vrot.lane.b32.xlu0 %v394, 109
        %v403 = vpop.permute.xlu0 %402
        %vm404 = vcmask 891904
        %v405 = vsel %vm404, %v399, %v401
        %v406 = vsel %vm404, %v401, %v403
        %410 = vst [vmem:[#allocation3 + $0x30] sm:$0xf] %v405
        %411 = vst [vmem:[#allocation3 + $0x38] sm:$0xf] %v406
        %412 = vst.msk [vmem:[#allocation3 + $0x40] sm:$0xf] %vm328, %v403
        %v413 = vld [vmem:[#allocation2] sm:$0xff]
        %v414 = vld [vmem:[#allocation2 + $0x8] sm:$0xf]
        %v417 = vcombine.low %v413, %v413
        %v418 = vcombine.low %v414, %v414
        %419 = vrot.lane.b32.xlu0 %v417, 108
        %v420 = vpop.permute.xlu0 %419
        %421 = vrot.lane.b32.xlu0 %v413, 108
        %v422 = vpop.permute.xlu0 %421
        %423 = vrot.lane.b32.xlu0 %v418, 108
        %v424 = vpop.permute.xlu0 %423
        %vm425 = vcmask 883712
        %v426 = vsel %vm425, %v420, %v422
        %v427 = vsel %vm425, %v422, %v424
        %431 = vst [vmem:[#allocation3 + $0x30] sm:$0xf0] %v426
        %432 = vst [vmem:[#allocation3 + $0x38] sm:$0xf0] %v427
        %433 = vst.msk [vmem:[#allocation3 + $0x40] sm:$0xf0] %vm350, %v424
        %v434 = vld [vmem:[#allocation2] sm:$0xff]
        %v435 = vld [vmem:[#allocation2 + $0x8] sm:$0xf]
        %v438 = vcombine.high %v434, %v434
        %439 = vrot.lane.b32.xlu0 %v434, 92
        %v440 = vpop.permute.xlu0 %439
        %441 = vrot.lane.b32.xlu0 %v438, 92
        %v442 = vpop.permute.xlu0 %441
        %443 = vrot.lane.b32.xlu0 %v435, 92
        %v444 = vpop.permute.xlu0 %443
        %vm445 = vcmask 752640
        %v446 = vsel %vm445, %v440, %v442
        %v447 = vsel %vm445, %v442, %v444
        %451 = vst [vmem:[#allocation3 + $0x48] sm:$0xf] %v446
        %452 = vst [vmem:[#allocation3 + $0x50] sm:$0xf] %v447
        %453 = vst.msk [vmem:[#allocation3 + $0x58] sm:$0xf] %vm328, %v444
        %v454 = vld [vmem:[#allocation2] sm:$0xff]
        %v455 = vld [vmem:[#allocation2 + $0x8] sm:$0xf]
        %v458 = vcombine.low %v454, %v454
        %v459 = vcombine.low %v455, %v455
        %460 = vrot.lane.b32.xlu0 %v458, 91
        %v461 = vpop.permute.xlu0 %460
        %462 = vrot.lane.b32.xlu0 %v454, 91
        %v463 = vpop.permute.xlu0 %462
        %464 = vrot.lane.b32.xlu0 %v459, 91
        %v465 = vpop.permute.xlu0 %464
        %vm466 = vcmask 744448
        %v467 = vsel %vm466, %v461, %v463
        %v468 = vsel %vm466, %v463, %v465
        %472 = vst [vmem:[#allocation3 + $0x48] sm:$0xf0] %v467
        %473 = vst [vmem:[#allocation3 + $0x50] sm:$0xf0] %v468
        %474 = vst.msk [vmem:[#allocation3 + $0x58] sm:$0xf0] %vm350, %v465
        %v475 = vld [vmem:[#allocation2] sm:$0xff]
        %v476 = vld [vmem:[#allocation2 + $0x8] sm:$0xf]
        %v479 = vcombine.high %v475, %v475
        %480 = vrot.lane.b32.xlu0 %v475, 90
        %v481 = vpop.permute.xlu0 %480
        %482 = vrot.lane.b32.xlu0 %v479, 90
        %v483 = vpop.permute.xlu0 %482
        %484 = vrot.lane.b32.xlu0 %v476, 90
        %v485 = vpop.permute.xlu0 %484
        %vm486 = vcmask 736256
        %v487 = vsel %vm486, %v481, %v483
        %v488 = vsel %vm486, %v483, %v485
        %492 = vst [vmem:[#allocation3 + $0x60] sm:$0xf] %v487
        %493 = vst [vmem:[#allocation3 + $0x68] sm:$0xf] %v488
        %494 = vst.msk [vmem:[#allocation3 + $0x70] sm:$0xf] %vm328, %v485
        %v495 = vld [vmem:[#allocation4] sm:$0xff]
        %v496 = vld [vmem:[#allocation3] sm:$0xff]
        %v497 = vld [vmem:[#allocation3 + $0x8] sm:$0xff]
        %v498 = vld [vmem:[#allocation3 + $0x10] sm:$0xff]
        %v499 = vld [vmem:[#allocation3 + $0x18] sm:$0xff]
        %v500 = vld [vmem:[#allocation3 + $0x20] sm:$0xff]
        %v501 = vld [vmem:[#allocation3 + $0x28] sm:$0xff]
        %v502 = vld [vmem:[#allocation3 + $0x30] sm:$0xff]
        %v503 = vld [vmem:[#allocation3 + $0x38] sm:$0xff]
        %v504 = vld [vmem:[#allocation3 + $0x40] sm:$0xff]
        %v505 = vld [vmem:[#allocation3 + $0x48] sm:$0xff]
        %v506 = vld [vmem:[#allocation3 + $0x50] sm:$0xff]
        %v507 = vld [vmem:[#allocation3 + $0x58] sm:$0xff]
        %v508 = vld [vmem:[#allocation3 + $0x60] sm:$0xf]
        %v509 = vld [vmem:[#allocation3 + $0x68] sm:$0xf]
        %v510 = vld [vmem:[#allocation3 + $0x70] sm:$0xf]
        %vm511 = vcmask 293888
        %v513 = vsel %vm511, %v495, 0
        %vm515 = vcmask 1043456
        %v517 = vsel %vm515, %v508, 0
        %v520 = vsel %vm515, %v509, 0
        %v523 = vsel %vm515, %v510, 0
        %525 = vmatprep.subr.mxu0 0.0
        %526 = vmatpush1.msra.mxu0 0.0
        %527 = vmatprep.subr.mxu0 0.0
        %528 = vmatpush1.msra.mxu0 0.0
        %529 = vmatprep.subr.mxu0 0.0
        %530 = vmatpush1.msra.mxu0 0.0
        %531 = vmatprep.subr.mxu0 0.0
        %532 = vmatpush1.msra.mxu0 0.0
        %533 = vmatprep.subr.mxu0 0.0
        %534 = vmatpush1.msra.mxu0 0.0
        %535 = vmatprep.subr.mxu0 0.0
        %536 = vmatpush1.msra.mxu0 0.0
        %537 = vmatprep.subr.mxu0 0.0
        %538 = vmatpush1.msra.mxu0 0.0
        %539 = vmatprep.subr.mxu0 0.0
        %540 = vmatpush1.msra.mxu0 0.0
        %541 = vmatprep.subr.mxu0 0.0
        %542 = vmatpush1.msra.mxu0 0.0
        %543 = vmatprep.subr.mxu0 0.0
        %544 = vmatpush1.msra.mxu0 0.0
        %545 = vmatprep.subr.mxu0 0.0
        %546 = vmatpush1.msra.mxu0 0.0
        %547 = vmatprep.subr.mxu0 %v520
        %548 = vmatpush1.msra.mxu0 %v517
        %549 = vmatprep.subr.mxu0 %v506
        %550 = vmatpush1.msra.mxu0 %v505
        %551 = vmatprep.subr.mxu0 %v503
        %552 = vmatpush1.msra.mxu0 %v502
        %553 = vmatprep.subr.mxu0 %v500
        %554 = vmatpush1.msra.mxu0 %v499
        %555 = vmatprep.subr.mxu0 %v497
        %556 = vmatpush1.msra.mxu0 %v496
        %557 = vmatprep.subr.mxu0 0.0
        %558 = vmatpush2.msra.mxu0 0.0
        %559 = vmatprep.subr.mxu0 0.0
        %560 = vmatpush2.msra.mxu0 0.0
        %561 = vmatprep.subr.mxu0 0.0
        %562 = vmatpush2.msra.mxu0 0.0
        %563 = vmatprep.subr.mxu0 0.0
        %564 = vmatpush2.msra.mxu0 0.0
        %565 = vmatprep.subr.mxu0 0.0
        %566 = vmatpush2.msra.mxu0 0.0
        %567 = vmatprep.subr.mxu0 0.0
        %568 = vmatpush2.msra.mxu0 0.0
        %569 = vmatprep.subr.mxu0 0.0
        %570 = vmatpush2.msra.mxu0 0.0
        %571 = vmatprep.subr.mxu0 0.0
        %572 = vmatpush2.msra.mxu0 0.0
        %573 = vmatprep.subr.mxu0 0.0
        %574 = vmatpush2.msra.mxu0 0.0
        %575 = vmatprep.subr.mxu0 0.0
        %576 = vmatpush2.msra.mxu0 0.0
        %577 = vmatprep.subr.mxu0 0.0
        %578 = vmatpush2.msra.mxu0 0.0
        %579 = vmatprep.subr.mxu0 0.0
        %580 = vmatpush2.msra.mxu0 0.0
        %581 = vmatprep.subr.mxu0 0.0
        %582 = vmatpush2.msra.mxu0 0.0
        %583 = vmatprep.subr.mxu0 0.0
        %584 = vmatpush2.msra.mxu0 0.0
        %585 = vmatprep.subr.mxu0 0.0
        %586 = vmatpush2.msra.mxu0 0.0
        %587 = vmatprep.subr.mxu0 0.0
        %588 = vmatpush2.msra.mxu0 0.0
        %589 = vmatprep.mubr.f32.mxu0 0.0
        %590 = vmatmul.mubr.f32.gmra.mxu0 %v513
        %v591 = vpop.f32.mrf.mxu0
        %v592 = vadd.f32 0.0, %v591
        %v593 = vpop.f32.mrf.mxu0
        %v594 = vadd.f32 0.0, %v593
        %595 = vdwg.mxu0
        %596 = vmatprep.subr.mxu0 0.0
        %597 = vmatpush1.msra.mxu0 0.0
        %598 = vmatprep.subr.mxu0 0.0
        %599 = vmatpush1.msra.mxu0 0.0
        %600 = vmatprep.subr.mxu0 0.0
        %601 = vmatpush1.msra.mxu0 0.0
        %602 = vmatprep.subr.mxu0 0.0
        %603 = vmatpush1.msra.mxu0 0.0
        %604 = vmatprep.subr.mxu0 0.0
        %605 = vmatpush1.msra.mxu0 0.0
        %606 = vmatprep.subr.mxu0 0.0
        %607 = vmatpush1.msra.mxu0 0.0
        %608 = vmatprep.subr.mxu0 0.0
        %609 = vmatpush1.msra.mxu0 0.0
        %610 = vmatprep.subr.mxu0 0.0
        %611 = vmatpush1.msra.mxu0 0.0
        %612 = vmatprep.subr.mxu0 0.0
        %613 = vmatpush1.msra.mxu0 0.0
        %614 = vmatprep.subr.mxu0 0.0
        %615 = vmatpush1.msra.mxu0 0.0
        %616 = vmatprep.subr.mxu0 0.0
        %617 = vmatpush1.msra.mxu0 0.0
        %618 = vmatprep.subr.mxu0 0.0
        %619 = vmatpush1.msra.mxu0 %v523
        %620 = vmatprep.subr.mxu0 0.0
        %621 = vmatpush1.msra.mxu0 %v507
        %622 = vmatprep.subr.mxu0 0.0
        %623 = vmatpush1.msra.mxu0 %v504
        %624 = vmatprep.subr.mxu0 0.0
        %625 = vmatpush1.msra.mxu0 %v501
        %626 = vmatprep.subr.mxu0 0.0
        %627 = vmatpush1.msra.mxu0 %v498
        %628 = vmatprep.subr.mxu0 0.0
        %629 = vmatpush2.msra.mxu0 0.0
        %630 = vmatprep.subr.mxu0 0.0
        %631 = vmatpush2.msra.mxu0 0.0
        %632 = vmatprep.subr.mxu0 0.0
        %633 = vmatpush2.msra.mxu0 0.0
        %634 = vmatprep.subr.mxu0 0.0
        %635 = vmatpush2.msra.mxu0 0.0
        %636 = vmatprep.subr.mxu0 0.0
        %637 = vmatpush2.msra.mxu0 0.0
        %638 = vmatprep.subr.mxu0 0.0
        %639 = vmatpush2.msra.mxu0 0.0
        %640 = vmatprep.subr.mxu0 0.0
        %641 = vmatpush2.msra.mxu0 0.0
        %642 = vmatprep.subr.mxu0 0.0
        %643 = vmatpush2.msra.mxu0 0.0
        %644 = vmatprep.subr.mxu0 0.0
        %645 = vmatpush2.msra.mxu0 0.0
        %646 = vmatprep.subr.mxu0 0.0
        %647 = vmatpush2.msra.mxu0 0.0
        %648 = vmatprep.subr.mxu0 0.0
        %649 = vmatpush2.msra.mxu0 0.0
        %650 = vmatprep.subr.mxu0 0.0
        %651 = vmatpush2.msra.mxu0 0.0
        %652 = vmatprep.subr.mxu0 0.0
        %653 = vmatpush2.msra.mxu0 0.0
        %654 = vmatprep.subr.mxu0 0.0
        %655 = vmatpush2.msra.mxu0 0.0
        %656 = vmatprep.subr.mxu0 0.0
        %657 = vmatpush2.msra.mxu0 0.0
        %658 = vmatprep.subr.mxu0 0.0
        %659 = vmatpush2.msra.mxu0 0.0
        %660 = vmatprep.mubr.f32.mxu0 0.0
        %661 = vmatmul.mubr.f32.gmra.mxu0 %v513
        %v662 = vpop.f32.mrf.mxu0
        %v663 = vadd.f32 0.0, %v662
        %v664 = vpop.f32.mrf.mxu0
        %665 = vdwg.mxu0
        %667 = vrot.lane.b32.xlu0 %v592, 109
        %v668 = vpop.permute.xlu0 %667
        %s670 = smul.u32 %s17, 2
        %s671 = smul.addr %s670, 8
        %s672 = scalar_lea.vmem [#allocation7], %s671
        %vm673 = vcmask 130048
        %674 = vst.msk [vmem:[%s672] sm:$0xff] %vm673, %v668
        %675 = vrot.lane.b32.xlu0 %v592, 107
        %v676 = vpop.permute.xlu0 %675
        %vm678 = vcmask 261248
        %679 = vst.msk [vmem:[%s672] sm:$0xff] %vm678, %v676
        %680 = vrot.lane.b32.xlu0 %v592, 105
        %v681 = vpop.permute.xlu0 %680
        %vm683 = vcmask 392448
        %684 = vst.msk [vmem:[%s672] sm:$0xff] %vm683, %v681
        %685 = vrot.lane.b32.xlu0 %v592, 103
        %v686 = vpop.permute.xlu0 %685
        %vm688 = vcmask 523648
        %689 = vst.msk [vmem:[%s672] sm:$0xff] %vm688, %v686
        %690 = vrot.lane.b32.xlu0 %v592, 101
        %v691 = vpop.permute.xlu0 %690
        %vm693 = vcmask 654848
        %694 = vst.msk [vmem:[%s672] sm:$0xff] %vm693, %v691
        %695 = vrot.lane.b32.xlu0 %v592, 99
        %v696 = vpop.permute.xlu0 %695
        %vm698 = vcmask 786048
        %699 = vst.msk [vmem:[%s672] sm:$0xff] %vm698, %v696
        %701 = vrot.lane.b32.xlu0 %v592, 97
        %v702 = vpop.permute.xlu0 %701
        %703 = vrot.lane.b32.xlu0 %v594, 97
        %v704 = vpop.permute.xlu0 %703
        %vm705 = vcmask 793600
        %v706 = vsel %vm705, %v702, %v704
        %vm708 = vcmask 917248
        %709 = vst.msk [vmem:[%s672] sm:$0xff] %vm708, %v706
        %710 = vrot.lane.b32.xlu0 %v594, 95
        %v711 = vpop.permute.xlu0 %710
        %vm713 = vcmask 1048448
        %714 = vst.msk [vmem:[%s672] sm:$0xff] %vm713, %v711
        %715 = vrot.lane.b32.xlu0 %v594, 93
        %v716 = vpop.permute.xlu0 %715
        %718 = vst.msk [vmem:[%s672 + $0x8] sm:$0xff] %vm673, %v716
        %719 = vrot.lane.b32.xlu0 %v594, 91
        %v720 = vpop.permute.xlu0 %719
        %722 = vst.msk [vmem:[%s672 + $0x8] sm:$0xff] %vm678, %v720
        %723 = vrot.lane.b32.xlu0 %v594, 89
        %v724 = vpop.permute.xlu0 %723
        %726 = vst.msk [vmem:[%s672 + $0x8] sm:$0xff] %vm683, %v724
        %727 = vrot.lane.b32.xlu0 %v594, 87
        %v728 = vpop.permute.xlu0 %727
        %730 = vst.msk [vmem:[%s672 + $0x8] sm:$0xff] %vm688, %v728
        %731 = vrot.lane.b32.xlu0 %v594, 85
        %v732 = vpop.permute.xlu0 %731
        %734 = vst.msk [vmem:[%s672 + $0x8] sm:$0xff] %vm693, %v732
        %736 = vrot.lane.b32.xlu0 %v594, 83
        %v737 = vpop.permute.xlu0 %736
        %738 = vrot.lane.b32.xlu0 %v663, 83
        %v739 = vpop.permute.xlu0 %738
        %vm740 = vcmask 678912
        %v741 = vsel %vm740, %v737, %v739
        %743 = vst.msk [vmem:[%s672 + $0x8] sm:$0xff] %vm698, %v741
        %744 = vrot.lane.b32.xlu0 %v663, 81
        %v745 = vpop.permute.xlu0 %744
        %747 = vst.msk [vmem:[%s672 + $0x8] sm:$0xff] %vm708, %v745
        %748 = vrot.lane.b32.xlu0 %v663, 79
        %v749 = vpop.permute.xlu0 %748
        %751 = vst.msk [vmem:[%s672 + $0x8] sm:$0xff] %vm713, %v749
        %p752 = scmp.eq.s32.totalorder %s17, 1
        // Predicated region
        $region45: #{tpu_custom_call.1} parent=35 // pred_check
          %p753 = pneg %p752
        $region46: #{tpu_custom_call.1} parent=35 // pred_check_branch
          %755 = sbr.rel (%p753) target = $region48
        $region47: #{tpu_custom_call.1} parent=35 // pred_region
          %v756 = vld [vmem:[#allocation7] sm:$0xff]
          %v757 = vld [vmem:[#allocation7 + $0x8] sm:$0xff]
          %v758 = vld [vmem:[#allocation7 + $0x10] sm:$0xff]
          %v759 = vld [vmem:[#allocation7 + $0x18] sm:$0xff]
          %v760 = vadd.f32 %v756, %v757
          %761 = vadd.xlane.f32.xlu0 %v760
          %v762 = vpop.xlane.xlu0 %761
          %v763 = vadd.f32 %v758, %v759
          %764 = vadd.xlane.f32.xlu0 %v763
          %v765 = vpop.xlane.xlu0 %764
          %v766 = vadd.f32 %v762, %v765
          %v767 = vmul.f32 %v766, 0.001953125
          %v768 = vsub.f32 %v756, %v767
          %v769 = vsub.f32 %v757, %v767
          %v770 = vsub.f32 %v758, %v767
          %v771 = vsub.f32 %v759, %v767
          %v772 = vmul.f32 %v768, %v768
          %v773 = vmul.f32 %v769, %v769
          %v774 = vmul.f32 %v770, %v770
          %v775 = vmul.f32 %v771, %v771
          %v776 = vadd.f32 %v772, %v773
          %777 = vadd.xlane.f32.xlu0 %v776
          %v778 = vpop.xlane.xlu0 %777
          %v779 = vadd.f32 %v774, %v775
          %780 = vadd.xlane.f32.xlu0 %v779
          %v781 = vpop.xlane.xlu0 %780
          %v782 = vadd.f32 %v778, %v781
          %v783 = vmul.f32 %v782, 0.001953125
          %v784 = vld [vmem:[%s2] sm:$0xff]
          %v785 = vadd.f32 %v783, 1e-05
          %v786 = vrsqrt.pop %v785
          %v787 = vmul.f32 %v784, %v786
          %v788 = vld [vmem:[%s3] sm:$0xff]
          %v789 = vmul.f32 %v767, %v787
          %v790 = vsub.f32 %v788, %v789
          %792 = vset.pattern.permute.xlu0 0
          %793 = vperm.xlu0 %792, %v787
          %v794 = vpop.permute.xlu0 %793
          %v796 = vmul.f32 %v756, %v794
          %v797 = vmul.f32 %v757, %v794
          %v798 = vmul.f32 %v758, %v794
          %v799 = vmul.f32 %v759, %v794
          %801 = vset.pattern.permute.xlu0 0
          %802 = vperm.xlu0 %801, %v790
          %v803 = vpop.permute.xlu0 %802
          %v805 = vadd.f32 %v796, %v803
          %v806 = vadd.f32 %v797, %v803
          %v807 = vadd.f32 %v798, %v803
          %v808 = vadd.f32 %v799, %v803
          %v809 = vmax.f32 %v805, 0.0
          %v810 = vmax.f32 %v806, 0.0
          %v811 = vmax.f32 %v807, 0.0
          %v812 = vmax.f32 %v808, 0.0
          %813 = vst [vmem:[#allocation7] sm:$0xff] %v809
          %814 = vst [vmem:[#allocation7 + $0x8] sm:$0xff] %v810
          %815 = vst [vmem:[#allocation7 + $0x10] sm:$0xff] %v811
          %816 = vst [vmem:[#allocation7 + $0x18] sm:$0xff] %v812
        $region48: #{tpu_custom_call.1} parent=35 // pred_fallthru
          _
        // Predicated region
        $region49: #{tpu_custom_call.1} parent=35 // pred_check
          %p817 = pneg %p119
        $region50: #{tpu_custom_call.1} parent=35 // pred_check_branch
          %819 = sbr.rel (%p817) target = $region52
        $region51: #{tpu_custom_call.1} parent=35 // pred_region
          %s821 = ssub.s32 512, 512
          %822 = vsyncadd [#allocation6], %s821
          %s823 = sshll.u32 [#allocation7], 4
          %s824 = int_to_ptr.vmem [resolvable:$true] %s823
          %829 = dma.vmem_to_hbm [thread:$0]  %s824, 512, %s4, [#allocation6], 256, 256, 16
        $region52: #{tpu_custom_call.1} parent=35 // pred_fallthru
          _
        // Predicated region
        $region53: #{tpu_custom_call.1} parent=35 // pred_check
          %p830 = pneg %p119
        $region54: #{tpu_custom_call.1} parent=35 // pred_check_branch
          %832 = sbr.rel (%p830) target = $region56
        $region55: #{tpu_custom_call.1} parent=35 // pred_region
          %833 = dma.done [#allocation6], 512
        $region56: #{tpu_custom_call.1} parent=35 // pred_fallthru
          _
      $region36: #{tpu_custom_call.1} parent=5 // pred_fallthru
        _
      %p834 = scmp.le.s32.totalorder 2, %s12
      // Predicated region
      $region57: #{tpu_custom_call.1} parent=5 // pred_check
        %p835 = pneg %p834
      $region58: #{tpu_custom_call.1} parent=5 // pred_check_branch
        %837 = sbr.rel (%p835) target = $region60
      $region59: #{tpu_custom_call.1} parent=5 // pred_region
        %s838 = ssub.s32 %s12, 2
      $region60: #{tpu_custom_call.1} parent=5 // pred_fallthru
        _
    $region6: #{tpu_custom_call.1} parent=1 // loop_footer
      %s16 = sadd.s32 1, %s12
    $region7: #{tpu_custom_call.1} parent=1 // loop_footer_branch
      %11 = sbr.rel target = $region3
    $region8: #{tpu_custom_call.1} parent=1 // loop_exit
      _
    %839 = vsyncpa [#allocation5], 1
    %s840 = scalar_lea.sflag [#allocation5], 1
    %841 = vsyncpa %s840, 1
    %842 = vsyncpa [#allocation6], 1
    %s843 = scalar_lea.sflag [#allocation6], 1
    %844 = vsyncpa %s843, 1

</llo_original>
